<compile_context>
chip_gen: v5e
topology: v5e:2x2
jax: 0.10.0
libtpu: 0.0.40
codegen_flags: <defaults>
</compile_context>

<pallas_src>
import jax
import jax.numpy as jnp
from jax.experimental import pallas as pl
from jax.experimental.pallas import tpu as pltpu

_LANE = 128
_SUBLANE = 8


def _round_up(n, m):
    return ((n + m - 1) // m) * m


def _td3_policy_kernel(x_ref, w1_ref, b1_ref, w2_ref, b2_ref, w3_ref, b3_ref,
                       o_ref):
    """One (TB, state_dim) batch tile -> (TB, action_pad) bf16 output tile."""
    x = x_ref[...]                                            # bf16 (cast in wrapper)

    # Layer 1: MXU bf16 matmul, f32 accumulate; bias/relu in bf16.
    h1 = jnp.dot(x, w1_ref[...], preferred_element_type=jnp.float32)
    h1 = jnp.maximum(h1.astype(jnp.bfloat16) + b1_ref[...], 0)

    # Layer 2.
    h2 = jnp.dot(h1, w2_ref[...], preferred_element_type=jnp.float32)
    h2 = jnp.maximum(h2.astype(jnp.bfloat16) + b2_ref[...], 0)

    # Layer 3: keep f32 for bias + tanh, store bf16 (lane-dense, half the bytes).
    out = jnp.dot(h2, w3_ref[...], preferred_element_type=jnp.float32) + b3_ref[...]
    o_ref[...] = jnp.tanh(out).astype(jnp.bfloat16)


def td3_policy_forward(x, params, *, block_batch=2048):
    """x: (B, state_dim) f32. Returns (B, action_dim) f32."""
    w1, b1, w2, b2, w3, b3 = (params["w1"], params["b1"], params["w2"],
                              params["b2"], params["w3"], params["b3"])
    batch, state_dim = x.shape
    hidden_dim = w1.shape[1]
    action_dim = params["action_dim"]
    action_pad = w3.shape[1]          # already padded to lane width (128)

    # Padding-minimizing tile choice: split the batch into n near-equal tiles
    # of at most block_batch rows, rounded up to a sublane group (8).
    n_tiles = pl.cdiv(batch, block_batch)
    tb = _round_up(pl.cdiv(batch, n_tiles), _SUBLANE)
    batch_pad = _round_up(batch, tb)
    grid = (batch_pad // tb,)

    # Cast activations to bf16 once in the wrapper (halves streamed bytes);
    # pad the batch so the grid divides evenly -> no in-kernel masking.
    x = x.astype(jnp.bfloat16)
    if batch_pad != batch:
        x = jnp.pad(x, ((0, batch_pad - batch), (0, 0)))

    # Streaming tiles (block index follows the grid) vs VMEM-resident params
    # (constant block index -> loaded once, reused across all grid steps).
    def stream(shape):
        return pl.BlockSpec(shape, lambda i: (i, 0))

    def resident(shape):
        return pl.BlockSpec(shape, lambda i: (0, 0))

    flops = 2 * batch_pad * (state_dim * hidden_dim
                             + hidden_dim * hidden_dim
                             + hidden_dim * action_pad)
    bytes_accessed = (x.size * x.dtype.itemsize
                      + sum(int(p.size) * p.dtype.itemsize
                            for p in (w1, b1, w2, b2, w3, b3))
                      + batch_pad * action_pad * 2)           # bf16 output
    cost = pl.CostEstimate(flops=flops,
                           transcendentals=batch_pad * action_pad,
                           bytes_accessed=bytes_accessed)

    out = pl.pallas_call(
        _td3_policy_kernel,
        out_shape=jax.ShapeDtypeStruct((batch_pad, action_pad), jnp.bfloat16),
        grid=grid,
        in_specs=[
            stream((tb, state_dim)),
            resident(w1.shape), resident(b1.shape),
            resident(w2.shape), resident(b2.shape),
            resident(w3.shape), resident(b3.shape),
        ],
        out_specs=stream((tb, action_pad)),
        compiler_params=pltpu.CompilerParams(
            dimension_semantics=("parallel",)),
        cost_estimate=cost,
    )(x, w1, b1, w2, b2, w3, b3)

    return out[:batch, :action_dim].astype(jnp.float32)


def init_td3_params(key, state_dim, action_dim, hidden_dim=256):
    """Init mirroring nn.Linear's U(-1/sqrt(fan_in), 1/sqrt(fan_in)).

    Weights stored transposed (in_dim, out_dim) in bf16 (MXU operands);
    hidden biases (1, out_dim) in bf16 (VPU operands on v6e/v7x); final bias
    in f32.  The last layer is zero-padded from action_dim to 128 lanes for
    lane-dense output stores.
    """
    def linear(key, fan_in, fan_out, pad_out=None, bias_dtype=jnp.bfloat16):
        kw, kb = jax.random.split(key)
        bound = 1.0 / jnp.sqrt(jnp.float32(fan_in))
        w = jax.random.uniform(kw, (fan_in, fan_out), jnp.float32, -bound, bound)
        b = jax.random.uniform(kb, (1, fan_out), jnp.float32, -bound, bound)
        if pad_out is not None and pad_out > fan_out:
            w = jnp.pad(w, ((0, 0), (0, pad_out - fan_out)))
            b = jnp.pad(b, ((0, 0), (0, pad_out - fan_out)))
        return w.astype(jnp.bfloat16), b.astype(bias_dtype)

    action_pad = _round_up(action_dim, _LANE)
    k1, k2, k3 = jax.random.split(key, 3)
    w1, b1 = linear(k1, state_dim, hidden_dim)
    w2, b2 = linear(k2, hidden_dim, hidden_dim)
    w3, b3 = linear(k3, hidden_dim, action_dim, pad_out=action_pad,
                    bias_dtype=jnp.float32)
    return {"w1": w1, "b1": b1, "w2": w2, "b2": b2, "w3": w3, "b3": b3,
            "action_dim": action_dim}


def _reference_forward(x, p):
    """Pure-JAX f32 reference using the same (bf16-stored) parameters.

    Note: weights/activations are bf16 in the kernel, so expect ~1e-3..1e-2
    relative difference vs an f32 PyTorch TD3 — acceptable for RL actions.
    """
    w1 = p["w1"].astype(jnp.float32)
    b1 = p["b1"].astype(jnp.float32)
    w2 = p["w2"].astype(jnp.float32)
    b2 = p["b2"].astype(jnp.float32)
    w3 = p["w3"].astype(jnp.float32)[:, :p["action_dim"]]
    b3 = p["b3"].astype(jnp.float32)[:, :p["action_dim"]]
    h1 = jnp.maximum(x @ w1 + b1, 0.0)
    h2 = jnp.maximum(h1 @ w2 + b2, 0.0)
    return jnp.tanh(h2 @ w3 + b3)


if __name__ == "__main__":
    batch, state_dim, action_dim, hidden_dim = 2, 16, 8, 32

    key = jax.random.PRNGKey(0)
    kx, kp, kx2 = jax.random.split(key, 3)
    params = init_td3_params(kp, state_dim, action_dim, hidden_dim)

    # Small-batch check (typical RL actor call).
    x = jax.random.normal(kx, (batch, state_dim), jnp.float32)
    out = jax.block_until_ready(td3_policy_forward(x, params))
    ref = jax.block_until_ready(_reference_forward(x, params))
    assert out.shape == (batch, action_dim)
    assert jnp.allclose(out, ref, atol=2e-2, rtol=2e-2)

    # Larger, non-tile-divisible batch to exercise the padding-minimizing
    # tile selection and the multi-step grid path.
    x2 = jax.random.normal(kx2, (300, state_dim), jnp.float32)
    out2 = jax.block_until_ready(td3_policy_forward(x2, params, block_batch=256))
    ref2 = jax.block_until_ready(_reference_forward(x2, params))
    assert out2.shape == (300, action_dim)
    assert jnp.allclose(out2, ref2, atol=2e-2, rtol=2e-2)

    print("KERNEL_OK")
</pallas_src>

<mosaic_0001>
module attributes {stable_mosaic.version = 11 : i64} {
  func.func @_td3_policy_kernel(%arg0: i32, %arg1: memref<8x16xbf16, #tpu.memory_space<vmem>>, %arg2: memref<16x32xbf16, #tpu.memory_space<vmem>>, %arg3: memref<1x32xbf16, #tpu.memory_space<vmem>>, %arg4: memref<32x32xbf16, #tpu.memory_space<vmem>>, %arg5: memref<1x32xbf16, #tpu.memory_space<vmem>>, %arg6: memref<32x128xbf16, #tpu.memory_space<vmem>>, %arg7: memref<1x128xf32, #tpu.memory_space<vmem>>, %arg8: memref<8x128xbf16, #tpu.memory_space<vmem>>) attributes {dimension_semantics = [#tpu.dimension_semantics<parallel>], iteration_bounds = array<i64: 1>, scalar_prefetch = 0 : i64, scratch_operands = 0 : i64, tpu.core_type = #tpu.core_type<tc>, window_params = [{transform_indices = @transform_0, window_bounds = array<i64: 8, 16>}, {pipeline_mode = #tpu.pipeline_mode<synchronous>, transform_indices = @transform_1, window_bounds = array<i64: 16, 32>}, {pipeline_mode = #tpu.pipeline_mode<synchronous>, transform_indices = @transform_2, window_bounds = array<i64: 1, 32>}, {pipeline_mode = #tpu.pipeline_mode<synchronous>, transform_indices = @transform_3, window_bounds = array<i64: 32, 32>}, {pipeline_mode = #tpu.pipeline_mode<synchronous>, transform_indices = @transform_4, window_bounds = array<i64: 1, 32>}, {pipeline_mode = #tpu.pipeline_mode<synchronous>, transform_indices = @transform_5, window_bounds = array<i64: 32, 128>}, {pipeline_mode = #tpu.pipeline_mode<synchronous>, transform_indices = @transform_6, window_bounds = array<i64: 1, 128>}, {transform_indices = @transform_7, window_bounds = array<i64: 8, 128>}]} {
    %c0 = arith.constant 0 : index
    %c0_0 = arith.constant 0 : index
    %0 = vector.load %arg1[%c0, %c0_0] : memref<8x16xbf16, #tpu.memory_space<vmem>>, vector<8x16xbf16>
    %c0_1 = arith.constant 0 : index
    %c0_2 = arith.constant 0 : index
    %1 = vector.load %arg2[%c0_1, %c0_2] : memref<16x32xbf16, #tpu.memory_space<vmem>>, vector<16x32xbf16>
    %cst = arith.constant dense<0.000000e+00> : vector<8x32xf32>
    %2 = tpu.matmul %0, %1, %cst {dimension_numbers = #tpu.dot_dimension_numbers<[1], [0], [0], [1], [0, 0, 1, 1], [], []>} : vector<8x16xbf16>, vector<16x32xbf16>, vector<8x32xf32> -> vector<8x32xf32>
    %3 = arith.truncf %2 : vector<8x32xf32> to vector<8x32xbf16>
    %c0_3 = arith.constant 0 : index
    %c0_4 = arith.constant 0 : index
    %4 = vector.load %arg3[%c0_3, %c0_4] : memref<1x32xbf16, #tpu.memory_space<vmem>>, vector<1x32xbf16>
    %5 = vector.broadcast %4 : vector<1x32xbf16> to vector<8x32xbf16>
    %6 = arith.addf %3, %5 : vector<8x32xbf16>
    %cst_5 = arith.constant 0.000000e+00 : bf16
    %7 = vector.broadcast %cst_5 : bf16 to vector<8x32xbf16>
    %8 = arith.maximumf %6, %7 : vector<8x32xbf16>
    %c0_6 = arith.constant 0 : index
    %c0_7 = arith.constant 0 : index
    %9 = vector.load %arg4[%c0_6, %c0_7] : memref<32x32xbf16, #tpu.memory_space<vmem>>, vector<32x32xbf16>
    %cst_8 = arith.constant dense<0.000000e+00> : vector<8x32xf32>
    %10 = tpu.matmul %8, %9, %cst_8 {dimension_numbers = #tpu.dot_dimension_numbers<[1], [0], [0], [1], [0, 0, 1, 1], [], []>} : vector<8x32xbf16>, vector<32x32xbf16>, vector<8x32xf32> -> vector<8x32xf32>
    %11 = arith.truncf %10 : vector<8x32xf32> to vector<8x32xbf16>
    %c0_9 = arith.constant 0 : index
    %c0_10 = arith.constant 0 : index
    %12 = vector.load %arg5[%c0_9, %c0_10] : memref<1x32xbf16, #tpu.memory_space<vmem>>, vector<1x32xbf16>
    %13 = vector.broadcast %12 : vector<1x32xbf16> to vector<8x32xbf16>
    %14 = arith.addf %11, %13 : vector<8x32xbf16>
    %cst_11 = arith.constant 0.000000e+00 : bf16
    %15 = vector.broadcast %cst_11 : bf16 to vector<8x32xbf16>
    %16 = arith.maximumf %14, %15 : vector<8x32xbf16>
    %c0_12 = arith.constant 0 : index
    %c0_13 = arith.constant 0 : index
    %17 = vector.load %arg6[%c0_12, %c0_13] : memref<32x128xbf16, #tpu.memory_space<vmem>>, vector<32x128xbf16>
    %cst_14 = arith.constant dense<0.000000e+00> : vector<8x128xf32>
    %18 = tpu.matmul %16, %17, %cst_14 {dimension_numbers = #tpu.dot_dimension_numbers<[1], [0], [0], [1], [0, 0, 1, 1], [], []>} : vector<8x32xbf16>, vector<32x128xbf16>, vector<8x128xf32> -> vector<8x128xf32>
    %c0_15 = arith.constant 0 : index
    %c0_16 = arith.constant 0 : index
    %19 = vector.load %arg7[%c0_15, %c0_16] : memref<1x128xf32, #tpu.memory_space<vmem>>, vector<1x128xf32>
    %20 = vector.broadcast %19 : vector<1x128xf32> to vector<8x128xf32>
    %21 = arith.addf %18, %20 : vector<8x128xf32>
    %22 = math.tanh %21 : vector<8x128xf32>
    %23 = arith.truncf %22 : vector<8x128xf32> to vector<8x128xbf16>
    %c0_17 = arith.constant 0 : index
    %c0_18 = arith.constant 0 : index
    %24 = vector.load %arg8[%c0_17, %c0_18] : memref<8x128xbf16, #tpu.memory_space<vmem>>, vector<8x128xbf16>
    tpu.vector_store %arg8[%c0_17, %c0_18], %23 {strides = array<i32>} : memref<8x128xbf16, #tpu.memory_space<vmem>>, vector<8x128xbf16>,
    return
  }
  func.func @transform_0(%arg0: i32) -> (i32, i32) {
    %c0_i32 = arith.constant 0 : i32
    %c0_i32_0 = arith.constant 0 : i32
    return %arg0, %c0_i32 : i32, i32
  }
  func.func @transform_1(%arg0: i32) -> (i32, i32) {
    %c0_i32 = arith.constant 0 : i32
    %c0_i32_0 = arith.constant 0 : i32
    %c0_i32_1 = arith.constant 0 : i32
    return %c0_i32, %c0_i32_0 : i32, i32
  }
  func.func @transform_2(%arg0: i32) -> (i32, i32) {
    %c0_i32 = arith.constant 0 : i32
    %c0_i32_0 = arith.constant 0 : i32
    %c0_i32_1 = arith.constant 0 : i32
    return %c0_i32, %c0_i32_0 : i32, i32
  }
  func.func @transform_3(%arg0: i32) -> (i32, i32) {
    %c0_i32 = arith.constant 0 : i32
    %c0_i32_0 = arith.constant 0 : i32
    %c0_i32_1 = arith.constant 0 : i32
    return %c0_i32, %c0_i32_0 : i32, i32
  }
  func.func @transform_4(%arg0: i32) -> (i32, i32) {
    %c0_i32 = arith.constant 0 : i32
    %c0_i32_0 = arith.constant 0 : i32
    %c0_i32_1 = arith.constant 0 : i32
    return %c0_i32, %c0_i32_0 : i32, i32
  }
  func.func @transform_5(%arg0: i32) -> (i32, i32) {
    %c0_i32 = arith.constant 0 : i32
    %c0_i32_0 = arith.constant 0 : i32
    %c0_i32_1 = arith.constant 0 : i32
    return %c0_i32, %c0_i32_0 : i32, i32
  }
  func.func @transform_6(%arg0: i32) -> (i32, i32) {
    %c0_i32 = arith.constant 0 : i32
    %c0_i32_0 = arith.constant 0 : i32
    %c0_i32_1 = arith.constant 0 : i32
    return %c0_i32, %c0_i32_0 : i32, i32
  }
  func.func @transform_7(%arg0: i32) -> (i32, i32) {
    %c0_i32 = arith.constant 0 : i32
    %c0_i32_0 = arith.constant 0 : i32
    return %arg0, %c0_i32 : i32, i32
  }
}

</mosaic_0001>

<llo_original>
// kernel: tpu_custom_call.1
$region0: #{tpu_custom_call.1}
  #allocation0 [shape = 'u32[]', space=smem, size = 0x4, offset = 0x4, fixed_abs, tag = 'smem constant byte address 0x4 - core index']
  #allocation1 [shape = 'u32[72,128]{1,0:T(1,128)}', space=vmem, size = 0x9000, scoped, tag = 'internal scratch']
  %s0 = inlined_call_operand.hbm [shape: bf16[8,16], index: 0, kind: input, shape index: {}]
  %s1 = inlined_call_operand.hbm [shape: bf16[16,32], index: 1, kind: input, shape index: {}]
  %s2 = inlined_call_operand.vmem [shape: bf16[1,32], index: 2, kind: input, shape index: {}]
  %s3 = inlined_call_operand.hbm [shape: bf16[32,32], index: 3, kind: input, shape index: {}]
  %s4 = inlined_call_operand.vmem [shape: bf16[1,32], index: 4, kind: input, shape index: {}]
  %s5 = inlined_call_operand.hbm [shape: bf16[32,128], index: 5, kind: input, shape index: {}]
  %s6 = inlined_call_operand.vmem [shape: f32[1,128], index: 6, kind: input, shape index: {}]
  %s7 = inlined_call_operand.hbm [shape: bf16[8,128], index: 7, kind: output, shape index: {}]
  %s8 = sld [smem:[#allocation0]]
  $region54: #{tpu_custom_call.1} parent=0
    _
  %s10 = ssub.s32 1, %s8
  %s11 = scalar_select 0, %s10, %s8
  $region1: #{tpu_custom_call.1} parent=0
    #allocation2 [shape = 'u8[2048]{0}', space=vmem, size = 0x800, scoped, tag = 'input window, operand 0, single buffered']
    #allocation3 [shape = 's32[1]{0}', space=sflag, size = 0x4, scoped, tag = 'scoped memory for tpu_custom_call.1']
    #allocation4 [shape = 's32[1]{0}', space=sflag, size = 0x4, scoped, tag = 'scoped memory for tpu_custom_call.1']
    #allocation5 [shape = 'u8[4096]{0}', space=vmem, size = 0x1000, scoped, tag = 'input window, operand 1, single buffered']
    #allocation6 [shape = 's32[1]{0}', space=sflag, size = 0x4, scoped, tag = 'scoped memory for tpu_custom_call.1']
    #allocation7 [shape = 'u8[8192]{0}', space=vmem, size = 0x2000, scoped, tag = 'input window, operand 3, single buffered']
    #allocation8 [shape = 'u8[8192]{0}', space=vmem, size = 0x2000, scoped, tag = 'input window, operand 5, single buffered']
    #allocation9 [shape = 's32[1]{0}', space=sflag, size = 0x4, scoped, tag = 'scoped memory for tpu_custom_call.1']
    #allocation10 [shape = 'u8[2048]{0}', space=vmem, size = 0x800, scoped, tag = 'output window, operand 0, single buffered']
    %12 = vsyncpa [#allocation3], 0
    %13 = vsyncpa [#allocation6], 0
    %14 = vsyncpa [#allocation9], 0
    %15 = vsyncpa [#allocation4], 0
    // Predicated region
    $region2: #{tpu_custom_call.1} parent=1 // pred_check
      _
    $region3: #{tpu_custom_call.1} parent=1 // pred_check_branch
      %17 = sbr.rel (0) target = $region5
    $region4: #{tpu_custom_call.1} parent=1 // pred_region
      %19 = vsyncadd [#allocation3], 0
      %s21 = sshll.u32 %s0, 4
      %s22 = int_to_ptr.hbm [resolvable:$true] %s21
      %s23 = sshll.u32 [#allocation2], 4
      %s24 = int_to_ptr.vmem [resolvable:$true] %s23
      %26 = dma.hbm_to_vmem [thread:$0]  %s22, 64, %s24, [#allocation3]
    $region5: #{tpu_custom_call.1} parent=1 // pred_fallthru
      _
    // Predicated region
    $region6: #{tpu_custom_call.1} parent=1 // pred_check
      _
    $region7: #{tpu_custom_call.1} parent=1 // pred_check_branch
      %28 = sbr.rel (0) target = $region9
    $region8: #{tpu_custom_call.1} parent=1 // pred_region
      %30 = vsyncadd [#allocation6], 0
      %s31 = sshll.u32 %s1, 4
      %s32 = int_to_ptr.hbm [resolvable:$true] %s31
      %s33 = sshll.u32 [#allocation5], 4
      %s34 = int_to_ptr.vmem [resolvable:$true] %s33
      %39 = dma.hbm_to_vmem [thread:$0]  %s32, 128, %s34, [#allocation6], 64, 64, 4
    $region9: #{tpu_custom_call.1} parent=1 // pred_fallthru
      _
    // Predicated region
    $region10: #{tpu_custom_call.1} parent=1 // pred_check
      _
    $region11: #{tpu_custom_call.1} parent=1 // pred_check_branch
      %41 = sbr.rel (0) target = $region13
    $region12: #{tpu_custom_call.1} parent=1 // pred_region
      _
    $region13: #{tpu_custom_call.1} parent=1 // pred_fallthru
      _
    // Predicated region
    $region14: #{tpu_custom_call.1} parent=1 // pred_check
      _
    $region15: #{tpu_custom_call.1} parent=1 // pred_check_branch
      %43 = sbr.rel (0) target = $region17
    $region16: #{tpu_custom_call.1} parent=1 // pred_region
      %45 = vsyncadd [#allocation6], 0
      %s46 = sshll.u32 %s3, 4
      %s47 = int_to_ptr.hbm [resolvable:$true] %s46
      %s48 = sshll.u32 [#allocation7], 4
      %s49 = int_to_ptr.vmem [resolvable:$true] %s48
      %54 = dma.hbm_to_vmem [thread:$0]  %s47, 256, %s49, [#allocation6], 64, 64, 4
    $region17: #{tpu_custom_call.1} parent=1 // pred_fallthru
      _
    // Predicated region
    $region18: #{tpu_custom_call.1} parent=1 // pred_check
      _
    $region19: #{tpu_custom_call.1} parent=1 // pred_check_branch
      %56 = sbr.rel (0) target = $region21
    $region20: #{tpu_custom_call.1} parent=1 // pred_region
      _
    $region21: #{tpu_custom_call.1} parent=1 // pred_fallthru
      _
    // Predicated region
    $region22: #{tpu_custom_call.1} parent=1 // pred_check
      _
    $region23: #{tpu_custom_call.1} parent=1 // pred_check_branch
      %58 = sbr.rel (0) target = $region25
    $region24: #{tpu_custom_call.1} parent=1 // pred_region
      %60 = vsyncadd [#allocation9], 0
      %s61 = sshll.u32 %s5, 4
      %s62 = int_to_ptr.hbm [resolvable:$true] %s61
      %s63 = sshll.u32 [#allocation8], 4
      %s64 = int_to_ptr.vmem [resolvable:$true] %s63
      %69 = dma.hbm_to_vmem [thread:$0]  %s62, 256, %s64, [#allocation9], 64, 64, 4
    $region25: #{tpu_custom_call.1} parent=1 // pred_fallthru
      _
    // Predicated region
    $region26: #{tpu_custom_call.1} parent=1 // pred_check
      _
    $region27: #{tpu_custom_call.1} parent=1 // pred_check_branch
      %71 = sbr.rel (0) target = $region29
    $region28: #{tpu_custom_call.1} parent=1 // pred_region
      _
    $region29: #{tpu_custom_call.1} parent=1 // pred_fallthru
      _
    // Predicated region
    $region30: #{tpu_custom_call.1} parent=1 // pred_check
      _
    $region31: #{tpu_custom_call.1} parent=1 // pred_check_branch
      %73 = sbr.rel (0) target = $region33
    $region32: #{tpu_custom_call.1} parent=1 // pred_region
      %75 = dma.done [#allocation3], 64
    $region33: #{tpu_custom_call.1} parent=1 // pred_fallthru
      _
    // Predicated region
    $region34: #{tpu_custom_call.1} parent=1 // pred_check
      _
    $region35: #{tpu_custom_call.1} parent=1 // pred_check_branch
      %77 = sbr.rel (0) target = $region37
    $region36: #{tpu_custom_call.1} parent=1 // pred_region
      %79 = dma.done [#allocation6], 128
    $region37: #{tpu_custom_call.1} parent=1 // pred_fallthru
      _
    // Predicated region
    $region38: #{tpu_custom_call.1} parent=1 // pred_check
      _
    $region39: #{tpu_custom_call.1} parent=1 // pred_check_branch
      %81 = sbr.rel (0) target = $region41
    $region40: #{tpu_custom_call.1} parent=1 // pred_region
      %83 = dma.done [#allocation6], 256
    $region41: #{tpu_custom_call.1} parent=1 // pred_fallthru
      _
    // Predicated region
    $region42: #{tpu_custom_call.1} parent=1 // pred_check
      _
    $region43: #{tpu_custom_call.1} parent=1 // pred_check_branch
      %85 = sbr.rel (0) target = $region45
    $region44: #{tpu_custom_call.1} parent=1 // pred_region
      %87 = dma.done [#allocation9], 256
    $region45: #{tpu_custom_call.1} parent=1 // pred_fallthru
      _
    %v89 = vld [vmem:[#allocation2] sm:$0xf]
    %v90 = vld [vmem:[#allocation5] sm:$0xf]
    %v91 = vld [vmem:[#allocation5 + $0x4] sm:$0xf]
    %v94 = vunpack.c.l.b16 %v90
    %v95 = vunpack.c.l.b16 %v91
    %v96 = vpack.c.b16 %v95, %v94
    %vm98 = vcmask 130048
    %v100 = vsel %vm98, %v89, 0
    %102 = vmatpush.bf16.msra.mxu0 0
    %103 = vmatpush.bf16.msra.mxu0 0
    %104 = vmatpush.bf16.msra.mxu0 0
    %105 = vmatpush.bf16.msra.mxu0 0
    %106 = vmatpush.bf16.msra.mxu0 0
    %107 = vmatpush.bf16.msra.mxu0 0
    %108 = vmatpush.bf16.msra.mxu0 0
    %109 = vmatpush.bf16.msra.mxu0 %v96
    %110 = vmatmul.bf16.gmra.mxu0 %v100
    %v111 = vpop.f32.mrf.mxu0
    %v112 = vadd.f32 0.0, %v111
    %v113 = vpop.f32.mrf.mxu0
    %114 = vdwg.mxu0
    %v115 = vpack.c.bf16 %v112, %v112
    %v116 = vld [vmem:[%s2] sm:$0x1]
    %v118 = vpack.i.b16 %v116, %v116
    %v120 = vperm.slane %v118, 0
    %v121 = vunpack.c.l.bf16 %v115
    %v122 = vunpack.c.l.bf16 %v120
    %v123 = vadd.f32 %v121, %v122
    %v124 = vpack.c.bf16 %v123, %v123
    %v125 = vunpack.c.l.bf16 %v124
    %v126 = vmax.f32 %v125, 0.0
    %v127 = vpack.c.bf16 %v126, %v126
    %v128 = vld [vmem:[#allocation7] sm:$0xf]
    %v129 = vld [vmem:[#allocation7 + $0x4] sm:$0xf]
    %v130 = vld [vmem:[#allocation7 + $0x8] sm:$0xf]
    %v131 = vld [vmem:[#allocation7 + $0xc] sm:$0xf]
    %v136 = vunpack.c.l.b16 %v128
    %v137 = vunpack.c.l.b16 %v129
    %v138 = vunpack.c.l.b16 %v130
    %v139 = vunpack.c.l.b16 %v131
    %v140 = vpack.c.b16 %v137, %v136
    %v141 = vpack.c.b16 %v139, %v138
    %vm144 = vcmask 261120
    %v146 = vsel %vm144, %v127, 0
    %148 = vmatpush.bf16.msra.mxu0 0
    %149 = vmatpush.bf16.msra.mxu0 0
    %150 = vmatpush.bf16.msra.mxu0 0
    %151 = vmatpush.bf16.msra.mxu0 0
    %152 = vmatpush.bf16.msra.mxu0 0
    %153 = vmatpush.bf16.msra.mxu0 0
    %154 = vmatpush.bf16.msra.mxu0 %v141
    %155 = vmatpush.bf16.msra.mxu0 %v140
    %156 = vmatmul.bf16.gmra.mxu0 %v146
    %v157 = vpop.f32.mrf.mxu0
    %v158 = vadd.f32 0.0, %v157
    %v159 = vpop.f32.mrf.mxu0
    %160 = vdwg.mxu0
    %v161 = vpack.c.bf16 %v158, %v158
    %v162 = vld [vmem:[%s4] sm:$0x1]
    %v164 = vpack.i.b16 %v162, %v162
    %v166 = vperm.slane %v164, 0
    %v167 = vunpack.c.l.bf16 %v161
    %v168 = vunpack.c.l.bf16 %v166
    %v169 = vadd.f32 %v167, %v168
    %v170 = vpack.c.bf16 %v169, %v169
    %v171 = vunpack.c.l.bf16 %v170
    %v172 = vmax.f32 %v171, 0.0
    %v173 = vpack.c.bf16 %v172, %v172
    %v174 = vld [vmem:[#allocation8] sm:$0xf]
    %v175 = vld [vmem:[#allocation8 + $0x4] sm:$0xf]
    %v176 = vld [vmem:[#allocation8 + $0x8] sm:$0xf]
    %v177 = vld [vmem:[#allocation8 + $0xc] sm:$0xf]
    %v178 = vld [vmem:[%s6] sm:$0x1]
    %v180 = vperm.slane %v178, 0
    %v186 = vunpack.c.l.b16 %v174
    %v187 = vunpack.c.l.b16 %v175
    %v188 = vunpack.c.l.b16 %v176
    %v189 = vunpack.c.l.b16 %v177
    %v190 = vpack.c.b16 %v187, %v186
    %v191 = vpack.c.b16 %v189, %v188
    %v195 = vsel %vm144, %v173, 0
    %197 = vmatpush.bf16.msra.mxu0 0
    %198 = vmatpush.bf16.msra.mxu0 0
    %199 = vmatpush.bf16.msra.mxu0 0
    %200 = vmatpush.bf16.msra.mxu0 0
    %201 = vmatpush.bf16.msra.mxu0 0
    %202 = vmatpush.bf16.msra.mxu0 0
    %203 = vmatpush.bf16.msra.mxu0 %v191
    %204 = vmatpush.bf16.msra.mxu0 %v190
    %205 = vmatmul.bf16.gmra.mxu0 %v195
    %v206 = vpop.f32.mrf.mxu0
    %v207 = vadd.f32 %v180, %v206
    %v208 = vpop.f32.mrf.mxu0
    %209 = vdwg.mxu0
    %v210 = vtanh.pop %v207
    %v211 = vpack.c.bf16 %v210, %v210
    %212 = vst [vmem:[#allocation10] sm:$0xf] %v211
    // Predicated region
    $region46: #{tpu_custom_call.1} parent=1 // pred_check
      _
    $region47: #{tpu_custom_call.1} parent=1 // pred_check_branch
      %214 = sbr.rel (0) target = $region49
    $region48: #{tpu_custom_call.1} parent=1 // pred_region
      %216 = vsyncadd [#allocation4], 0
      %s218 = sshll.u32 [#allocation10], 4
      %s219 = int_to_ptr.vmem [resolvable:$true] %s218
      %s220 = sshll.u32 %s7, 4
      %s221 = int_to_ptr.hbm [resolvable:$true] %s220
      %223 = dma.vmem_to_hbm [thread:$0]  %s219, 64, %s221, [#allocation4]
    $region49: #{tpu_custom_call.1} parent=1 // pred_fallthru
      _
    // Predicated region
    $region50: #{tpu_custom_call.1} parent=1 // pred_check
      _
    $region51: #{tpu_custom_call.1} parent=1 // pred_check_branch
      %225 = sbr.rel (0) target = $region53
    $region52: #{tpu_custom_call.1} parent=1 // pred_region
      %227 = dma.done [#allocation4], 64
    $region53: #{tpu_custom_call.1} parent=1 // pred_fallthru
      _
    %228 = vsyncpa [#allocation3], 1
    %229 = vsyncpa [#allocation6], 1
    %230 = vsyncpa [#allocation9], 1
    %231 = vsyncpa [#allocation4], 1

</llo_original>
